<compile_context>
chip_gen: v6e
topology: v6e:2x2x1
jax: 0.10.0
libtpu: 0.0.40
codegen_flags: <defaults>
</compile_context>

<pallas_src>
import jax
import jax.numpy as jnp
from jax.experimental import pallas as pl
from jax.experimental.pallas import tpu as pltpu


def _round_up(x, m):
    return (x + m - 1) // m * m


def _divisors_desc(total, unit):
    """Divisors of `total` that are multiples of `unit`, descending (unit | total)."""
    return [d for d in range(total, 0, -unit) if total % d == 0]


# ----------------------------------------------------------------------------
# Kernel: out[b,o,m] = sum_i x[i,b,m] * w[i,o,m]   (complex, split re/im)
# Block shapes:
#   x*: (Cin, tb,  tm) f32      w*: (Cin, tco, tm) f32      o*: (tb, tco, tm) f32
# ----------------------------------------------------------------------------
def _spectral_mul_kernel(xr_ref, xi_ref, wr_ref, wi_ref, or_ref, oi_ref):
    cin = wr_ref.shape[0]

    def cmul(i):
        xr = xr_ref[i][:, None, :]           # (tb, 1, tm)
        xi = xi_ref[i][:, None, :]
        wr = wr_ref[i][None, :, :]           # (1, tco, tm)
        wi = wi_ref[i][None, :, :]
        # (a+ib)(c+id) = (ac - bd) + i(ad + bc)
        return xr * wr - xi * wi, xr * wi + xi * wr

    # i = 0 (and i = 1 when present) initialise the accumulators directly —
    # no zero-fill pass, one store for the first two channels.
    pr, pi = cmul(0)
    if cin > 1:
        qr, qi = cmul(1)
        pr, pi = pr + qr, pi + qi
    or_ref[...] = pr
    oi_ref[...] = pi

    start = 2 if cin > 1 else 1
    npairs = (cin - start) // 2

    if npairs > 0:
        def body(k, carry):
            i = start + 2 * k
            ar, ai = cmul(i)
            br, bi = cmul(i + 1)
            or_ref[...] += ar + br           # one ref RMW per TWO input channels
            oi_ref[...] += ai + bi
            return carry

        jax.lax.fori_loop(0, npairs, body, 0, unroll=True)

    if (cin - start) % 2 == 1:               # odd tail channel
        tr, ti = cmul(cin - 1)
        or_ref[...] += tr
        oi_ref[...] += ti


# ----------------------------------------------------------------------------
# Tile selection: biggest exact-divisor tiles that fit the VMEM budget.
# ----------------------------------------------------------------------------
_VMEM_BUDGET = 32 * 1024 * 1024   # target for the double-buffered working set


def _pick_tiles(cin, bpad, coutpad, mpad):
    tb_cands = _divisors_desc(bpad, 8) if bpad % 8 == 0 else [bpad]
    tco_cands = _divisors_desc(coutpad, 8)
    tm_cands = _divisors_desc(mpad, 128)

    def vmem_bytes(tb, tco, tm):
        io = 2 * 4 * (cin * tb * tm + cin * tco * tm + tb * tco * tm)  # re+im f32
        scratch = 8 * 4 * tb * tco * tm      # elementwise temporaries (upper bound)
        return 2 * io + scratch              # x2: Pallas double-buffers each stream

    # Greedy: full Cout first (x slab then fetched exactly once), then the
    # largest lane tile, then the largest batch tile that still fits VMEM.
    for tco in tco_cands:
        for tm in tm_cands:
            for tb in tb_cands:
                if vmem_bytes(tb, tco, tm) <= _VMEM_BUDGET:
                    return tb, tco, tm, vmem_bytes(tb, tco, tm)
    tb, tco, tm = tb_cands[-1], tco_cands[-1], tm_cands[-1]
    return tb, tco, tm, vmem_bytes(tb, tco, tm)


def _pallas_complex_mul(xr, xi, wr, wi):
    """xr/xi: (Cin, Bpad, Mpad); wr/wi: (Cin, Coutpad, Mpad)
    -> (o_r, o_i): (Bpad, Coutpad, Mpad) float32."""
    cin, bpad, mpad = xr.shape
    coutpad = wr.shape[1]

    tb, tco, tm, need = _pick_tiles(cin, bpad, coutpad, mpad)
    nb, no, nm = bpad // tb, coutpad // tco, mpad // tm

    # Headroom over the estimated need; stays well inside v7x's 64 MiB VMEM.
    vmem_limit = min(max(need + (8 << 20), 16 << 20), 48 << 20)

    flops = 8 * bpad * cin * coutpad * mpad
    bytes_accessed = 4 * 2 * (cin * bpad * mpad + cin * coutpad * mpad
                              + bpad * coutpad * mpad)

    # Batch is the innermost grid axis: the weight index_map is independent of
    # b, so the weight tile stays VMEM-resident across batch tiles.
    grid = (no, nm, nb)

    return pl.pallas_call(
        _spectral_mul_kernel,
        out_shape=(
            jax.ShapeDtypeStruct((bpad, coutpad, mpad), jnp.float32),
            jax.ShapeDtypeStruct((bpad, coutpad, mpad), jnp.float32),
        ),
        grid=grid,
        in_specs=[
            pl.BlockSpec((cin, tb, tm), lambda o, m, b: (0, b, m)),
            pl.BlockSpec((cin, tb, tm), lambda o, m, b: (0, b, m)),
            pl.BlockSpec((cin, tco, tm), lambda o, m, b: (0, o, m)),
            pl.BlockSpec((cin, tco, tm), lambda o, m, b: (0, o, m)),
        ],
        out_specs=(
            pl.BlockSpec((tb, tco, tm), lambda o, m, b: (b, o, m)),
            pl.BlockSpec((tb, tco, tm), lambda o, m, b: (b, o, m)),
        ),
        compiler_params=pltpu.CompilerParams(
            dimension_semantics=("parallel", "parallel", "parallel"),
            vmem_limit_bytes=vmem_limit,
        ),
        cost_estimate=pl.CostEstimate(
            flops=flops, transcendentals=0, bytes_accessed=bytes_accessed),
    )(xr, xi, wr, wi)


# ----------------------------------------------------------------------------
# Forward pass
# ----------------------------------------------------------------------------
def spectral_conv2d(x, weights1, weights2, modes1, modes2):
    """x: (B, Cin, H, W) f32; weights*: (Cin, Cout, modes1, modes2) complex64
    -> (B, Cout, H, W) f32.  Mirrors the PyTorch SpectralConv2d.forward."""
    B, Cin, H, W = x.shape
    Cout = weights1.shape[1]
    Wf = W // 2 + 1
    m1, m2 = modes1, modes2
    M = 2 * m1 * m2

    # FFT (plain JAX).
    x_ft = jnp.fft.rfft2(x)                        # (B, Cin, H, Wf) complex64

    # Gather the two retained corner blocks, fuse them on one M axis and put
    # Cin leading (the kernel's reduction axis), B on sublanes, M on lanes.
    top = x_ft[:, :, :m1, :m2]                     # (B, Cin, m1, m2)
    bot = x_ft[:, :, H - m1:, :m2]                 # (B, Cin, m1, m2)
    xin = jnp.stack([top, bot], axis=2).reshape(B, Cin, M)
    xin = jnp.transpose(xin, (1, 0, 2))            # (Cin, B, M)

    win = jnp.stack([weights1, weights2], axis=2).reshape(Cin, Cout, M)

    # Padding for (8,128) BlockSpec divisibility and lane-dense stores.
    Mpad = _round_up(M, 128)
    Coutpad = _round_up(Cout, 8)
    Bpad = _round_up(B, 8) if B >= 8 else B        # block == full extent if B < 8

    def pad_x(a):      # (Cin, B, M) -> (Cin, Bpad, Mpad), zero-padded
        return jnp.pad(a, ((0, 0), (0, Bpad - B), (0, Mpad - M)))

    def pad_w(a):      # (Cin, Cout, M) -> (Cin, Coutpad, Mpad), zero-padded
        return jnp.pad(a, ((0, 0), (0, Coutpad - Cout), (0, Mpad - M)))

    xr = pad_x(jnp.real(xin).astype(jnp.float32))
    xi = pad_x(jnp.imag(xin).astype(jnp.float32))
    wr = pad_w(jnp.real(win).astype(jnp.float32))
    wi = pad_w(jnp.imag(win).astype(jnp.float32))

    # Hot path: complex channel mixing in the Pallas kernel.
    o_r, o_i = _pallas_complex_mul(xr, xi, wr, wi)

    out_modes = (o_r[:B, :Cout, :M] + 1j * o_i[:B, :Cout, :M]).astype(jnp.complex64)
    out_modes = out_modes.reshape(B, Cout, 2, m1, m2)

    # Scatter back into the zero spectrum and inverse FFT (plain JAX).
    # TODO(synk): irfft2 (and the zero+scatter) has no Pallas TPU equivalent.
    out_ft = jnp.zeros((B, Cout, H, Wf), dtype=jnp.complex64)
    out_ft = out_ft.at[:, :, :m1, :m2].set(out_modes[:, :, 0])
    out_ft = out_ft.at[:, :, H - m1:, :m2].set(out_modes[:, :, 1])
    return jnp.fft.irfft2(out_ft, s=(H, W)).astype(jnp.float32)


def _reference(x, weights1, weights2, modes1, modes2):
    """Pure-JAX reference (mirrors the PyTorch forward exactly)."""
    B, Cin, H, W = x.shape
    Cout = weights1.shape[1]
    Wf = W // 2 + 1
    x_ft = jnp.fft.rfft2(x)
    out_ft = jnp.zeros((B, Cout, H, Wf), dtype=jnp.complex64)
    out_ft = out_ft.at[:, :, :modes1, :modes2].set(
        jnp.einsum('bixy,ioxy->boxy', x_ft[:, :, :modes1, :modes2], weights1))
    out_ft = out_ft.at[:, :, H - modes1:, :modes2].set(
        jnp.einsum('bixy,ioxy->boxy', x_ft[:, :, H - modes1:, :modes2], weights2))
    return jnp.fft.irfft2(out_ft, s=(H, W)).astype(jnp.float32)


if __name__ == "__main__":
    # Small, deterministic setup (matches the PyTorch module's forward).
    B, Cin, Cout, H, W = 2, 4, 4, 16, 16
    modes1, modes2 = 4, 4
    scale = 1.0 / (Cin * Cout)

    key = jax.random.PRNGKey(0)
    kx, k1r, k1i, k2r, k2i = jax.random.split(key, 5)

    x = jax.random.normal(kx, (B, Cin, H, W), dtype=jnp.float32)

    # torch.rand(..., dtype=torch.cfloat) ~ U[0,1) real + i * U[0,1) imag
    w1 = (scale * (jax.random.uniform(k1r, (Cin, Cout, modes1, modes2))
                   + 1j * jax.random.uniform(k1i, (Cin, Cout, modes1, modes2)))
          ).astype(jnp.complex64)
    w2 = (scale * (jax.random.uniform(k2r, (Cin, Cout, modes1, modes2))
                   + 1j * jax.random.uniform(k2i, (Cin, Cout, modes1, modes2)))
          ).astype(jnp.complex64)

    fwd = jax.jit(spectral_conv2d, static_argnums=(3, 4))
    out = jax.block_until_ready(fwd(x, w1, w2, modes1, modes2))
    ref = jax.block_until_ready(_reference(x, w1, w2, modes1, modes2))

    assert out.shape == (B, Cout, H, W), out.shape
    max_err = float(jnp.max(jnp.abs(out - ref)))
    assert max_err < 1e-4, max_err

    print("KERNEL_OK")
</pallas_src>

<mosaic_0001>
module attributes {stable_mosaic.version = 11 : i64} {
  func.func @_spectral_mul_kernel(%arg0: i32, %arg1: i32, %arg2: i32, %arg3: memref<4x2x128xf32, #tpu.memory_space<vmem>>, %arg4: memref<4x2x128xf32, #tpu.memory_space<vmem>>, %arg5: memref<4x8x128xf32, #tpu.memory_space<vmem>>, %arg6: memref<4x8x128xf32, #tpu.memory_space<vmem>>, %arg7: memref<2x8x128xf32, #tpu.memory_space<vmem>>, %arg8: memref<2x8x128xf32, #tpu.memory_space<vmem>>) attributes {dimension_semantics = [#tpu.dimension_semantics<parallel>, #tpu.dimension_semantics<parallel>, #tpu.dimension_semantics<parallel>], iteration_bounds = array<i64: 1, 1, 1>, scalar_prefetch = 0 : i64, scratch_operands = 0 : i64, tpu.core_type = #tpu.core_type<tc>, window_params = [{transform_indices = @transform_0, window_bounds = array<i64: 4, 2, 128>}, {transform_indices = @transform_1, window_bounds = array<i64: 4, 2, 128>}, {transform_indices = @transform_2, window_bounds = array<i64: 4, 8, 128>}, {transform_indices = @transform_3, window_bounds = array<i64: 4, 8, 128>}, {transform_indices = @transform_4, window_bounds = array<i64: 2, 8, 128>}, {transform_indices = @transform_5, window_bounds = array<i64: 2, 8, 128>}]} {
    %c0 = arith.constant 0 : index
    %c0_0 = arith.constant 0 : index
    %c0_1 = arith.constant 0 : index
    %0 = vector.load %arg3[%c0, %c0_0, %c0_1] : memref<4x2x128xf32, #tpu.memory_space<vmem>>, vector<1x2x128xf32>
    %1 = vector.shape_cast %0 : vector<1x2x128xf32> to vector<2x128xf32>
    %2 = vector.shape_cast %1 : vector<2x128xf32> to vector<2x1x128xf32>
    %c0_2 = arith.constant 0 : index
    %c0_3 = arith.constant 0 : index
    %c0_4 = arith.constant 0 : index
    %3 = vector.load %arg4[%c0_2, %c0_3, %c0_4] : memref<4x2x128xf32, #tpu.memory_space<vmem>>, vector<1x2x128xf32>
    %4 = vector.shape_cast %3 : vector<1x2x128xf32> to vector<2x128xf32>
    %5 = vector.shape_cast %4 : vector<2x128xf32> to vector<2x1x128xf32>
    %c0_5 = arith.constant 0 : index
    %c0_6 = arith.constant 0 : index
    %c0_7 = arith.constant 0 : index
    %6 = vector.load %arg5[%c0_5, %c0_6, %c0_7] : memref<4x8x128xf32, #tpu.memory_space<vmem>>, vector<1x8x128xf32>
    %7 = vector.shape_cast %6 : vector<1x8x128xf32> to vector<8x128xf32>
    %8 = vector.shape_cast %7 : vector<8x128xf32> to vector<1x8x128xf32>
    %c0_8 = arith.constant 0 : index
    %c0_9 = arith.constant 0 : index
    %c0_10 = arith.constant 0 : index
    %9 = vector.load %arg6[%c0_8, %c0_9, %c0_10] : memref<4x8x128xf32, #tpu.memory_space<vmem>>, vector<1x8x128xf32>
    %10 = vector.shape_cast %9 : vector<1x8x128xf32> to vector<8x128xf32>
    %11 = vector.shape_cast %10 : vector<8x128xf32> to vector<1x8x128xf32>
    %12 = vector.broadcast %2 : vector<2x1x128xf32> to vector<2x8x128xf32>
    %13 = vector.broadcast %8 : vector<1x8x128xf32> to vector<2x8x128xf32>
    %14 = arith.mulf %12, %13 : vector<2x8x128xf32>
    %15 = vector.broadcast %5 : vector<2x1x128xf32> to vector<2x8x128xf32>
    %16 = vector.broadcast %11 : vector<1x8x128xf32> to vector<2x8x128xf32>
    %17 = arith.mulf %15, %16 : vector<2x8x128xf32>
    %18 = arith.subf %14, %17 : vector<2x8x128xf32>
    %19 = vector.broadcast %2 : vector<2x1x128xf32> to vector<2x8x128xf32>
    %20 = vector.broadcast %11 : vector<1x8x128xf32> to vector<2x8x128xf32>
    %21 = arith.mulf %19, %20 : vector<2x8x128xf32>
    %22 = vector.broadcast %5 : vector<2x1x128xf32> to vector<2x8x128xf32>
    %23 = vector.broadcast %8 : vector<1x8x128xf32> to vector<2x8x128xf32>
    %24 = arith.mulf %22, %23 : vector<2x8x128xf32>
    %25 = arith.addf %21, %24 : vector<2x8x128xf32>
    %c1 = arith.constant 1 : index
    %c0_11 = arith.constant 0 : index
    %c0_12 = arith.constant 0 : index
    %26 = vector.load %arg3[%c1, %c0_11, %c0_12] : memref<4x2x128xf32, #tpu.memory_space<vmem>>, vector<1x2x128xf32>
    %27 = vector.shape_cast %26 : vector<1x2x128xf32> to vector<2x128xf32>
    %28 = vector.shape_cast %27 : vector<2x128xf32> to vector<2x1x128xf32>
    %c1_13 = arith.constant 1 : index
    %c0_14 = arith.constant 0 : index
    %c0_15 = arith.constant 0 : index
    %29 = vector.load %arg4[%c1_13, %c0_14, %c0_15] : memref<4x2x128xf32, #tpu.memory_space<vmem>>, vector<1x2x128xf32>
    %30 = vector.shape_cast %29 : vector<1x2x128xf32> to vector<2x128xf32>
    %31 = vector.shape_cast %30 : vector<2x128xf32> to vector<2x1x128xf32>
    %c1_16 = arith.constant 1 : index
    %c0_17 = arith.constant 0 : index
    %c0_18 = arith.constant 0 : index
    %32 = vector.load %arg5[%c1_16, %c0_17, %c0_18] : memref<4x8x128xf32, #tpu.memory_space<vmem>>, vector<1x8x128xf32>
    %33 = vector.shape_cast %32 : vector<1x8x128xf32> to vector<8x128xf32>
    %34 = vector.shape_cast %33 : vector<8x128xf32> to vector<1x8x128xf32>
    %c1_19 = arith.constant 1 : index
    %c0_20 = arith.constant 0 : index
    %c0_21 = arith.constant 0 : index
    %35 = vector.load %arg6[%c1_19, %c0_20, %c0_21] : memref<4x8x128xf32, #tpu.memory_space<vmem>>, vector<1x8x128xf32>
    %36 = vector.shape_cast %35 : vector<1x8x128xf32> to vector<8x128xf32>
    %37 = vector.shape_cast %36 : vector<8x128xf32> to vector<1x8x128xf32>
    %38 = vector.broadcast %28 : vector<2x1x128xf32> to vector<2x8x128xf32>
    %39 = vector.broadcast %34 : vector<1x8x128xf32> to vector<2x8x128xf32>
    %40 = arith.mulf %38, %39 : vector<2x8x128xf32>
    %41 = vector.broadcast %31 : vector<2x1x128xf32> to vector<2x8x128xf32>
    %42 = vector.broadcast %37 : vector<1x8x128xf32> to vector<2x8x128xf32>
    %43 = arith.mulf %41, %42 : vector<2x8x128xf32>
    %44 = arith.subf %40, %43 : vector<2x8x128xf32>
    %45 = vector.broadcast %28 : vector<2x1x128xf32> to vector<2x8x128xf32>
    %46 = vector.broadcast %37 : vector<1x8x128xf32> to vector<2x8x128xf32>
    %47 = arith.mulf %45, %46 : vector<2x8x128xf32>
    %48 = vector.broadcast %31 : vector<2x1x128xf32> to vector<2x8x128xf32>
    %49 = vector.broadcast %34 : vector<1x8x128xf32> to vector<2x8x128xf32>
    %50 = arith.mulf %48, %49 : vector<2x8x128xf32>
    %51 = arith.addf %47, %50 : vector<2x8x128xf32>
    %52 = arith.addf %18, %44 : vector<2x8x128xf32>
    %53 = arith.addf %25, %51 : vector<2x8x128xf32>
    %c0_22 = arith.constant 0 : index
    %c0_23 = arith.constant 0 : index
    %c0_24 = arith.constant 0 : index
    %54 = vector.load %arg7[%c0_22, %c0_23, %c0_24] : memref<2x8x128xf32, #tpu.memory_space<vmem>>, vector<2x8x128xf32>
    tpu.vector_store %arg7[%c0_22, %c0_23, %c0_24], %52 {strides = array<i32>} : memref<2x8x128xf32, #tpu.memory_space<vmem>>, vector<2x8x128xf32>,
    %c0_25 = arith.constant 0 : index
    %c0_26 = arith.constant 0 : index
    %c0_27 = arith.constant 0 : index
    %55 = vector.load %arg8[%c0_25, %c0_26, %c0_27] : memref<2x8x128xf32, #tpu.memory_space<vmem>>, vector<2x8x128xf32>
    tpu.vector_store %arg8[%c0_25, %c0_26, %c0_27], %53 {strides = array<i32>} : memref<2x8x128xf32, #tpu.memory_space<vmem>>, vector<2x8x128xf32>,
    %c0_i32 = arith.constant 0 : i32
    %c2_i32 = arith.constant 2 : i32
    %56 = arith.muli %c2_i32, %c0_i32 : i32
    %c2_i32_28 = arith.constant 2 : i32
    %57 = arith.addi %c2_i32_28, %56 : i32
    %58 = arith.index_cast %57 : i32 to index
    %c0_29 = arith.constant 0 : index
    %c0_30 = arith.constant 0 : index
    %59 = vector.load %arg3[%58, %c0_29, %c0_30] : memref<4x2x128xf32, #tpu.memory_space<vmem>>, vector<1x2x128xf32>
    %60 = vector.shape_cast %59 : vector<1x2x128xf32> to vector<2x128xf32>
    %61 = vector.shape_cast %60 : vector<2x128xf32> to vector<2x1x128xf32>
    %62 = arith.index_cast %57 : i32 to index
    %c0_31 = arith.constant 0 : index
    %c0_32 = arith.constant 0 : index
    %63 = vector.load %arg4[%62, %c0_31, %c0_32] : memref<4x2x128xf32, #tpu.memory_space<vmem>>, vector<1x2x128xf32>
    %64 = vector.shape_cast %63 : vector<1x2x128xf32> to vector<2x128xf32>
    %65 = vector.shape_cast %64 : vector<2x128xf32> to vector<2x1x128xf32>
    %66 = arith.index_cast %57 : i32 to index
    %c0_33 = arith.constant 0 : index
    %c0_34 = arith.constant 0 : index
    %67 = vector.load %arg5[%66, %c0_33, %c0_34] : memref<4x8x128xf32, #tpu.memory_space<vmem>>, vector<1x8x128xf32>
    %68 = vector.shape_cast %67 : vector<1x8x128xf32> to vector<8x128xf32>
    %69 = vector.shape_cast %68 : vector<8x128xf32> to vector<1x8x128xf32>
    %70 = arith.index_cast %57 : i32 to index
    %c0_35 = arith.constant 0 : index
    %c0_36 = arith.constant 0 : index
    %71 = vector.load %arg6[%70, %c0_35, %c0_36] : memref<4x8x128xf32, #tpu.memory_space<vmem>>, vector<1x8x128xf32>
    %72 = vector.shape_cast %71 : vector<1x8x128xf32> to vector<8x128xf32>
    %73 = vector.shape_cast %72 : vector<8x128xf32> to vector<1x8x128xf32>
    %74 = vector.broadcast %61 : vector<2x1x128xf32> to vector<2x8x128xf32>
    %75 = vector.broadcast %69 : vector<1x8x128xf32> to vector<2x8x128xf32>
    %76 = arith.mulf %74, %75 : vector<2x8x128xf32>
    %77 = vector.broadcast %65 : vector<2x1x128xf32> to vector<2x8x128xf32>
    %78 = vector.broadcast %73 : vector<1x8x128xf32> to vector<2x8x128xf32>
    %79 = arith.mulf %77, %78 : vector<2x8x128xf32>
    %80 = arith.subf %76, %79 : vector<2x8x128xf32>
    %81 = vector.broadcast %61 : vector<2x1x128xf32> to vector<2x8x128xf32>
    %82 = vector.broadcast %73 : vector<1x8x128xf32> to vector<2x8x128xf32>
    %83 = arith.mulf %81, %82 : vector<2x8x128xf32>
    %84 = vector.broadcast %65 : vector<2x1x128xf32> to vector<2x8x128xf32>
    %85 = vector.broadcast %69 : vector<1x8x128xf32> to vector<2x8x128xf32>
    %86 = arith.mulf %84, %85 : vector<2x8x128xf32>
    %87 = arith.addf %83, %86 : vector<2x8x128xf32>
    %c1_i32 = arith.constant 1 : i32
    %88 = arith.addi %57, %c1_i32 : i32
    %89 = arith.index_cast %88 : i32 to index
    %c0_37 = arith.constant 0 : index
    %c0_38 = arith.constant 0 : index
    %90 = vector.load %arg3[%89, %c0_37, %c0_38] : memref<4x2x128xf32, #tpu.memory_space<vmem>>, vector<1x2x128xf32>
    %91 = vector.shape_cast %90 : vector<1x2x128xf32> to vector<2x128xf32>
    %92 = vector.shape_cast %91 : vector<2x128xf32> to vector<2x1x128xf32>
    %93 = arith.index_cast %88 : i32 to index
    %c0_39 = arith.constant 0 : index
    %c0_40 = arith.constant 0 : index
    %94 = vector.load %arg4[%93, %c0_39, %c0_40] : memref<4x2x128xf32, #tpu.memory_space<vmem>>, vector<1x2x128xf32>
    %95 = vector.shape_cast %94 : vector<1x2x128xf32> to vector<2x128xf32>
    %96 = vector.shape_cast %95 : vector<2x128xf32> to vector<2x1x128xf32>
    %97 = arith.index_cast %88 : i32 to index
    %c0_41 = arith.constant 0 : index
    %c0_42 = arith.constant 0 : index
    %98 = vector.load %arg5[%97, %c0_41, %c0_42] : memref<4x8x128xf32, #tpu.memory_space<vmem>>, vector<1x8x128xf32>
    %99 = vector.shape_cast %98 : vector<1x8x128xf32> to vector<8x128xf32>
    %100 = vector.shape_cast %99 : vector<8x128xf32> to vector<1x8x128xf32>
    %101 = arith.index_cast %88 : i32 to index
    %c0_43 = arith.constant 0 : index
    %c0_44 = arith.constant 0 : index
    %102 = vector.load %arg6[%101, %c0_43, %c0_44] : memref<4x8x128xf32, #tpu.memory_space<vmem>>, vector<1x8x128xf32>
    %103 = vector.shape_cast %102 : vector<1x8x128xf32> to vector<8x128xf32>
    %104 = vector.shape_cast %103 : vector<8x128xf32> to vector<1x8x128xf32>
    %105 = vector.broadcast %92 : vector<2x1x128xf32> to vector<2x8x128xf32>
    %106 = vector.broadcast %100 : vector<1x8x128xf32> to vector<2x8x128xf32>
    %107 = arith.mulf %105, %106 : vector<2x8x128xf32>
    %108 = vector.broadcast %96 : vector<2x1x128xf32> to vector<2x8x128xf32>
    %109 = vector.broadcast %104 : vector<1x8x128xf32> to vector<2x8x128xf32>
    %110 = arith.mulf %108, %109 : vector<2x8x128xf32>
    %111 = arith.subf %107, %110 : vector<2x8x128xf32>
    %112 = vector.broadcast %92 : vector<2x1x128xf32> to vector<2x8x128xf32>
    %113 = vector.broadcast %104 : vector<1x8x128xf32> to vector<2x8x128xf32>
    %114 = arith.mulf %112, %113 : vector<2x8x128xf32>
    %115 = vector.broadcast %96 : vector<2x1x128xf32> to vector<2x8x128xf32>
    %116 = vector.broadcast %100 : vector<1x8x128xf32> to vector<2x8x128xf32>
    %117 = arith.mulf %115, %116 : vector<2x8x128xf32>
    %118 = arith.addf %114, %117 : vector<2x8x128xf32>
    %c0_45 = arith.constant 0 : index
    %c0_46 = arith.constant 0 : index
    %c0_47 = arith.constant 0 : index
    %119 = vector.load %arg7[%c0_45, %c0_46, %c0_47] : memref<2x8x128xf32, #tpu.memory_space<vmem>>, vector<2x8x128xf32>
    %120 = arith.addf %80, %111 : vector<2x8x128xf32>
    %121 = arith.addf %119, %120 : vector<2x8x128xf32>
    %c0_48 = arith.constant 0 : index
    %c0_49 = arith.constant 0 : index
    %c0_50 = arith.constant 0 : index
    %122 = vector.load %arg7[%c0_48, %c0_49, %c0_50] : memref<2x8x128xf32, #tpu.memory_space<vmem>>, vector<2x8x128xf32>
    tpu.vector_store %arg7[%c0_48, %c0_49, %c0_50], %121 {strides = array<i32>} : memref<2x8x128xf32, #tpu.memory_space<vmem>>, vector<2x8x128xf32>,
    %c0_51 = arith.constant 0 : index
    %c0_52 = arith.constant 0 : index
    %c0_53 = arith.constant 0 : index
    %123 = vector.load %arg8[%c0_51, %c0_52, %c0_53] : memref<2x8x128xf32, #tpu.memory_space<vmem>>, vector<2x8x128xf32>
    %124 = arith.addf %87, %118 : vector<2x8x128xf32>
    %125 = arith.addf %123, %124 : vector<2x8x128xf32>
    %c0_54 = arith.constant 0 : index
    %c0_55 = arith.constant 0 : index
    %c0_56 = arith.constant 0 : index
    %126 = vector.load %arg8[%c0_54, %c0_55, %c0_56] : memref<2x8x128xf32, #tpu.memory_space<vmem>>, vector<2x8x128xf32>
    tpu.vector_store %arg8[%c0_54, %c0_55, %c0_56], %125 {strides = array<i32>} : memref<2x8x128xf32, #tpu.memory_space<vmem>>, vector<2x8x128xf32>,
    %c1_i32_57 = arith.constant 1 : i32
    return
  }
  func.func @transform_0(%arg0: i32, %arg1: i32, %arg2: i32) -> (i32, i32, i32) {
    %c0_i32 = arith.constant 0 : i32
    %c0_i32_0 = arith.constant 0 : i32
    return %c0_i32, %arg2, %arg1 : i32, i32, i32
  }
  func.func @transform_1(%arg0: i32, %arg1: i32, %arg2: i32) -> (i32, i32, i32) {
    %c0_i32 = arith.constant 0 : i32
    %c0_i32_0 = arith.constant 0 : i32
    return %c0_i32, %arg2, %arg1 : i32, i32, i32
  }
  func.func @transform_2(%arg0: i32, %arg1: i32, %arg2: i32) -> (i32, i32, i32) {
    %c0_i32 = arith.constant 0 : i32
    %c0_i32_0 = arith.constant 0 : i32
    return %c0_i32, %arg0, %arg1 : i32, i32, i32
  }
  func.func @transform_3(%arg0: i32, %arg1: i32, %arg2: i32) -> (i32, i32, i32) {
    %c0_i32 = arith.constant 0 : i32
    %c0_i32_0 = arith.constant 0 : i32
    return %c0_i32, %arg0, %arg1 : i32, i32, i32
  }
  func.func @transform_4(%arg0: i32, %arg1: i32, %arg2: i32) -> (i32, i32, i32) {
    %c0_i32 = arith.constant 0 : i32
    return %arg2, %arg0, %arg1 : i32, i32, i32
  }
  func.func @transform_5(%arg0: i32, %arg1: i32, %arg2: i32) -> (i32, i32, i32) {
    %c0_i32 = arith.constant 0 : i32
    return %arg2, %arg0, %arg1 : i32, i32, i32
  }
}

</mosaic_0001>

<llo_original>
// kernel: custom-call
$region0: #{custom-call}
  %s0 = inlined_call_operand.hbm [shape: c64[4,4,4,4], index: 0, kind: input, shape index: {}]
  %s1 = inlined_call_operand.vmem [shape: f32[4,4,4,4], index: 1, kind: output, shape index: {}]
  $region1: #{custom-call} parent=0
    #allocation0 [shape = 's32[1]{0}', space=sflag, size = 0x4, scoped, tag = 'scoped memory for custom-call']
    %2 = vsyncpa [#allocation0], 0
    %s3 = sshll.u32 %s1, 4
    %s4 = int_to_ptr.vmem [resolvable:$true] %s3
    %6 = dma.hbm_to_vmem [thread:$0]  %s0, 1024, %s4, [#allocation0]
    %7 = dma.done [#allocation0], 1024
    %8 = vsyncpa [#allocation0], 1

// kernel: custom-call.1
$region0: #{custom-call.1}
  %s0 = inlined_call_operand.hbm [shape: c64[4,4,4,4], index: 0, kind: input, shape index: {}]
  %s1 = inlined_call_operand.vmem [shape: f32[4,4,4,4], index: 1, kind: output, shape index: {}]
  %s2 = scalar_lea.hbm %s0, 1024
  $region1: #{custom-call.1} parent=0
    #allocation0 [shape = 's32[1]{0}', space=sflag, size = 0x4, scoped, tag = 'scoped memory for custom-call.1']
    %3 = vsyncpa [#allocation0], 0
    %s4 = sshll.u32 %s1, 4
    %s5 = int_to_ptr.vmem [resolvable:$true] %s4
    %7 = dma.hbm_to_vmem [thread:$0]  %s2, 1024, %s5, [#allocation0]
    %8 = dma.done [#allocation0], 1024
    %9 = vsyncpa [#allocation0], 1

// kernel: reverse.0
$region0: #{reverse.0}
  %s0 = inlined_call_operand.vmem [shape: f32[2,4,16,7], index: 0, kind: input, shape index: {}]
  %s1 = inlined_call_operand.vmem [shape: f32[2,4,16,7], index: 1, kind: output, shape index: {}]
  $region1: #{reverse.0} parent=0
    #allocation0 [shape = 'u8[65536]{0}', space=vmem, size = 0x10000, scoped, tag = 'operand span for operand 0']
    #allocation1 [shape = 'u8[32768]{0}', space=vmem, size = 0x8000, scoped, tag = 'operand span for operand 1']
    %s2 = scalar_lea.vmem [#allocation0], 8
    // Predicated region
    $region2: #{reverse.0} parent=1 // pred_check
      _
    $region3: #{reverse.0} parent=1 // pred_check_branch
      %4 = sbr.rel (0) target = $region5
    $region4: #{reverse.0} parent=1 // pred_region
      // Predicated region
      $region6: #{reverse.0} parent=4 // pred_check
        _
      $region7: #{reverse.0} parent=4 // pred_check_branch
        %6 = sbr.rel (0) target = $region9
      $region8: #{reverse.0} parent=4 // pred_region
        // Predicated region
        $region21: #{reverse.0} parent=8 // pred_check
          _
        $region22: #{reverse.0} parent=8 // pred_check_branch
          %36 = sbr.rel (0) target = $region24
        $region23: #{reverse.0} parent=8 // pred_region
          loop: start=0, step=1, limit=1
          $region25: #{reverse.0} parent=23 // loop_pre_header
            _
          $region26: #{reverse.0} parent=23 // loop_header
            %s38 = sphi 0, %s42
            %p39 = scmp.ge.s32.totalorder %s38, 1
            %s43 = sphi %s0, %s0
            %s44 = sphi %s2, %s2
          $region27: #{reverse.0} parent=23 // loop_header_branch
            %41 = sbr.rel (%p39) target = $region31
          $region28: #{reverse.0} parent=23 // loop_body
            %v45 = vld [vmem:[%s43] sm:$0xff]
            %46 = vst [vmem:[%s44] sm:$0xff] %v45
            %v47 = vld [vmem:[%s43 + $0x8] sm:$0xff]
            %48 = vst [vmem:[%s44 + $0x10] sm:$0xff] %v47
            %v49 = vld [vmem:[%s43 + $0x10] sm:$0xff]
            %50 = vst [vmem:[%s44 + $0x20] sm:$0xff] %v49
            %v51 = vld [vmem:[%s43 + $0x18] sm:$0xff]
            %52 = vst [vmem:[%s44 + $0x30] sm:$0xff] %v51
            %v53 = vld [vmem:[%s43 + $0x20] sm:$0xff]
            %54 = vst [vmem:[%s44 + $0x40] sm:$0xff] %v53
            %v55 = vld [vmem:[%s43 + $0x28] sm:$0xff]
            %56 = vst [vmem:[%s44 + $0x50] sm:$0xff] %v55
            %v57 = vld [vmem:[%s43 + $0x30] sm:$0xff]
            %58 = vst [vmem:[%s44 + $0x60] sm:$0xff] %v57
            %v59 = vld [vmem:[%s43 + $0x38] sm:$0xff]
            %60 = vst [vmem:[%s44 + $0x70] sm:$0xff] %v59
          $region29: #{reverse.0} parent=23 // loop_footer
            %s42 = sadd.s32 1, %s38
          $region30: #{reverse.0} parent=23 // loop_footer_branch
            %37 = sbr.rel target = $region26
          $region31: #{reverse.0} parent=23 // loop_exit
            _
        $region24: #{reverse.0} parent=8 // pred_fallthru
          _
        // Predicated region
        $region32: #{reverse.0} parent=8 // pred_check
          _
        $region33: #{reverse.0} parent=8 // pred_check_branch
          %62 = sbr.rel target = $region35
        $region34: #{reverse.0} parent=8 // pred_region
          _
        $region35: #{reverse.0} parent=8 // pred_fallthru
          _
      $region9: #{reverse.0} parent=4 // pred_fallthru
        _
      // Predicated region
      $region10: #{reverse.0} parent=4 // pred_check
        _
      $region11: #{reverse.0} parent=4 // pred_check_branch
        %8 = sbr.rel target = $region13
      $region12: #{reverse.0} parent=4 // pred_region
        %s10 = ssub.s32 256, 1
        loop: start=0, step=1, limit=1
        $region14: #{reverse.0} parent=12 // loop_pre_header
          _
        $region15: #{reverse.0} parent=12 // loop_header
          %s12 = sphi 0, %s16
          %p13 = scmp.ge.s32.totalorder %s12, 1
          %s17 = sphi %s0, %s0
          %s18 = sphi %s2, %s2
        $region16: #{reverse.0} parent=12 // loop_header_branch
          %15 = sbr.rel (%p13) target = $region20
        $region17: #{reverse.0} parent=12 // loop_body
          %v19 = vld [vmem:[%s17] sm:%s10]
          %20 = vst [vmem:[%s18] sm:%s10] %v19
          %v21 = vld [vmem:[%s17 + $0x8] sm:%s10]
          %22 = vst [vmem:[%s18 + $0x10] sm:%s10] %v21
          %v23 = vld [vmem:[%s17 + $0x10] sm:%s10]
          %24 = vst [vmem:[%s18 + $0x20] sm:%s10] %v23
          %v25 = vld [vmem:[%s17 + $0x18] sm:%s10]
          %26 = vst [vmem:[%s18 + $0x30] sm:%s10] %v25
          %v27 = vld [vmem:[%s17 + $0x20] sm:%s10]
          %28 = vst [vmem:[%s18 + $0x40] sm:%s10] %v27
          %v29 = vld [vmem:[%s17 + $0x28] sm:%s10]
          %30 = vst [vmem:[%s18 + $0x50] sm:%s10] %v29
          %v31 = vld [vmem:[%s17 + $0x30] sm:%s10]
          %32 = vst [vmem:[%s18 + $0x60] sm:%s10] %v31
          %v33 = vld [vmem:[%s17 + $0x38] sm:%s10]
          %34 = vst [vmem:[%s18 + $0x70] sm:%s10] %v33
        $region18: #{reverse.0} parent=12 // loop_footer
          %s16 = sadd.s32 1, %s12
        $region19: #{reverse.0} parent=12 // loop_footer_branch
          %11 = sbr.rel target = $region15
        $region20: #{reverse.0} parent=12 // loop_exit
          _
      $region13: #{reverse.0} parent=4 // pred_fallthru
        _
    $region5: #{reverse.0} parent=1 // pred_fallthru
      _
    %63 = vnop
    %s64 = scalar_lea.vmem [#allocation0], 7
    %v65 = vld [vmem:[%s64] ss:$-1 sm:$0xff]
    %v66 = vrot.slane %v65, 1
    %67 = vst [vmem:[#allocation1] sm:$0xff] %v66
    %s68 = scalar_lea.vmem [#allocation0], 8
    %s69 = scalar_lea.vmem %s68, 7 [#allocation0]
    %v70 = vld [vmem:[%s69] ss:$-1 sm:$0xff]
    %v71 = vrot.slane %v70, 1
    %v72 = vlaneseq
    %v73 = vshrl.u32 %v72, 7
    %vm74 = vcmp.lt.s32.totalorder %v73, 7
    %75 = vst.msk [vmem:[#allocation1] sm:$0xff] %vm74, %v71
    %s76 = scalar_lea.vmem [#allocation1], 8
    %s77 = scalar_lea.vmem [#allocation0], 16
    %s78 = scalar_lea.vmem %s77, 7 [#allocation0]
    %v79 = vld [vmem:[%s78] ss:$-1 sm:$0xff]
    %v80 = vrot.slane %v79, 1
    %81 = vst [vmem:[%s76] sm:$0xff] %v80
    %s82 = scalar_lea.vmem %s77, 8 [#allocation0]
    %s83 = scalar_lea.vmem %s82, 7 [#allocation0]
    %v84 = vld [vmem:[%s83] ss:$-1 sm:$0xff]
    %v85 = vrot.slane %v84, 1
    %v86 = vlaneseq
    %v87 = vshrl.u32 %v86, 7
    %vm88 = vcmp.lt.s32.totalorder %v87, 7
    %89 = vst.msk [vmem:[%s76] sm:$0xff] %vm88, %v85
    %s90 = scalar_lea.vmem [#allocation1], 16
    %s91 = scalar_lea.vmem [#allocation0], 32
    %s92 = scalar_lea.vmem %s91, 7 [#allocation0]
    %v93 = vld [vmem:[%s92] ss:$-1 sm:$0xff]
    %v94 = vrot.slane %v93, 1
    %95 = vst [vmem:[%s90] sm:$0xff] %v94
    %s96 = scalar_lea.vmem %s91, 8 [#allocation0]
    %s97 = scalar_lea.vmem %s96, 7 [#allocation0]
    %v98 = vld [vmem:[%s97] ss:$-1 sm:$0xff]
    %v99 = vrot.slane %v98, 1
    %v100 = vlaneseq
    %v101 = vshrl.u32 %v100, 7
    %vm102 = vcmp.lt.s32.totalorder %v101, 7
    %103 = vst.msk [vmem:[%s90] sm:$0xff] %vm102, %v99
    %s104 = scalar_lea.vmem [#allocation1], 24
    %s105 = scalar_lea.vmem [#allocation0], 48
    %s106 = scalar_lea.vmem %s105, 7 [#allocation0]
    %v107 = vld [vmem:[%s106] ss:$-1 sm:$0xff]
    %v108 = vrot.slane %v107, 1
    %109 = vst [vmem:[%s104] sm:$0xff] %v108
    %s110 = scalar_lea.vmem %s105, 8 [#allocation0]
    %s111 = scalar_lea.vmem %s110, 7 [#allocation0]
    %v112 = vld [vmem:[%s111] ss:$-1 sm:$0xff]
    %v113 = vrot.slane %v112, 1
    %v114 = vlaneseq
    %v115 = vshrl.u32 %v114, 7
    %vm116 = vcmp.lt.s32.totalorder %v115, 7
    %117 = vst.msk [vmem:[%s104] sm:$0xff] %vm116, %v113
    %s118 = scalar_lea.vmem [#allocation1], 32
    %s119 = scalar_lea.vmem [#allocation0], 64
    %s120 = scalar_lea.vmem %s119, 7 [#allocation0]
    %v121 = vld [vmem:[%s120] ss:$-1 sm:$0xff]
    %v122 = vrot.slane %v121, 1
    %123 = vst [vmem:[%s118] sm:$0xff] %v122
    %s124 = scalar_lea.vmem %s119, 8 [#allocation0]
    %s125 = scalar_lea.vmem %s124, 7 [#allocation0]
    %v126 = vld [vmem:[%s125] ss:$-1 sm:$0xff]
    %v127 = vrot.slane %v126, 1
    %v128 = vlaneseq
    %v129 = vshrl.u32 %v128, 7
    %vm130 = vcmp.lt.s32.totalorder %v129, 7
    %131 = vst.msk [vmem:[%s118] sm:$0xff] %vm130, %v127
    %s132 = scalar_lea.vmem [#allocation1], 40
    %s133 = scalar_lea.vmem [#allocation0], 80
    %s134 = scalar_lea.vmem %s133, 7 [#allocation0]
    %v135 = vld [vmem:[%s134] ss:$-1 sm:$0xff]
    %v136 = vrot.slane %v135, 1
    %137 = vst [vmem:[%s132] sm:$0xff] %v136
    %s138 = scalar_lea.vmem %s133, 8 [#allocation0]
    %s139 = scalar_lea.vmem %s138, 7 [#allocation0]
    %v140 = vld [vmem:[%s139] ss:$-1 sm:$0xff]
    %v141 = vrot.slane %v140, 1
    %v142 = vlaneseq
    %v143 = vshrl.u32 %v142, 7
    %vm144 = vcmp.lt.s32.totalorder %v143, 7
    %145 = vst.msk [vmem:[%s132] sm:$0xff] %vm144, %v141
    %s146 = scalar_lea.vmem [#allocation1], 48
    %s147 = scalar_lea.vmem [#allocation0], 96
    %s148 = scalar_lea.vmem %s147, 7 [#allocation0]
    %v149 = vld [vmem:[%s148] ss:$-1 sm:$0xff]
    %v150 = vrot.slane %v149, 1
    %151 = vst [vmem:[%s146] sm:$0xff] %v150
    %s152 = scalar_lea.vmem %s147, 8 [#allocation0]
    %s153 = scalar_lea.vmem %s152, 7 [#allocation0]
    %v154 = vld [vmem:[%s153] ss:$-1 sm:$0xff]
    %v155 = vrot.slane %v154, 1
    %v156 = vlaneseq
    %v157 = vshrl.u32 %v156, 7
    %vm158 = vcmp.lt.s32.totalorder %v157, 7
    %159 = vst.msk [vmem:[%s146] sm:$0xff] %vm158, %v155
    %s160 = scalar_lea.vmem [#allocation1], 56
    %s161 = scalar_lea.vmem [#allocation0], 112
    %s162 = scalar_lea.vmem %s161, 7 [#allocation0]
    %v163 = vld [vmem:[%s162] ss:$-1 sm:$0xff]
    %v164 = vrot.slane %v163, 1
    %165 = vst [vmem:[%s160] sm:$0xff] %v164
    %s166 = scalar_lea.vmem %s161, 8 [#allocation0]
    %s167 = scalar_lea.vmem %s166, 7 [#allocation0]
    %v168 = vld [vmem:[%s167] ss:$-1 sm:$0xff]
    %v169 = vrot.slane %v168, 1
    %v170 = vlaneseq
    %v171 = vshrl.u32 %v170, 7
    %vm172 = vcmp.lt.s32.totalorder %v171, 7
    %173 = vst.msk [vmem:[%s160] sm:$0xff] %vm172, %v169
    // Predicated region
    $region36: #{reverse.0} parent=1 // pred_check
      _
    $region37: #{reverse.0} parent=1 // pred_check_branch
      %175 = sbr.rel (0) target = $region39
    $region38: #{reverse.0} parent=1 // pred_region
      // Predicated region
      $region40: #{reverse.0} parent=38 // pred_check
        _
      $region41: #{reverse.0} parent=38 // pred_check_branch
        %177 = sbr.rel (0) target = $region43
      $region42: #{reverse.0} parent=38 // pred_region
        // Predicated region
        $region55: #{reverse.0} parent=42 // pred_check
          _
        $region56: #{reverse.0} parent=42 // pred_check_branch
          %207 = sbr.rel (0) target = $region58
        $region57: #{reverse.0} parent=42 // pred_region
          loop: start=0, step=1, limit=1
          $region59: #{reverse.0} parent=57 // loop_pre_header
            _
          $region60: #{reverse.0} parent=57 // loop_header
            %s209 = sphi 0, %s213
            %p210 = scmp.ge.s32.totalorder %s209, 1
            %s214 = sphi [#allocation1], [#allocation1]
            %s215 = sphi %s1, %s1
          $region61: #{reverse.0} parent=57 // loop_header_branch
            %212 = sbr.rel (%p210) target = $region65
          $region62: #{reverse.0} parent=57 // loop_body
            %v216 = vld [vmem:[%s214] sm:$0xff]
            %217 = vst [vmem:[%s215] sm:$0xff] %v216
            %v218 = vld [vmem:[%s214 + $0x8] sm:$0xff]
            %219 = vst [vmem:[%s215 + $0x8] sm:$0xff] %v218
            %v220 = vld [vmem:[%s214 + $0x10] sm:$0xff]
            %221 = vst [vmem:[%s215 + $0x10] sm:$0xff] %v220
            %v222 = vld [vmem:[%s214 + $0x18] sm:$0xff]
            %223 = vst [vmem:[%s215 + $0x18] sm:$0xff] %v222
            %v224 = vld [vmem:[%s214 + $0x20] sm:$0xff]
            %225 = vst [vmem:[%s215 + $0x20] sm:$0xff] %v224
            %v226 = vld [vmem:[%s214 + $0x28] sm:$0xff]
            %227 = vst [vmem:[%s215 + $0x28] sm:$0xff] %v226
            %v228 = vld [vmem:[%s214 + $0x30] sm:$0xff]
            %229 = vst [vmem:[%s215 + $0x30] sm:$0xff] %v228
            %v230 = vld [vmem:[%s214 + $0x38] sm:$0xff]
            %231 = vst [vmem:[%s215 + $0x38] sm:$0xff] %v230
          $region63: #{reverse.0} parent=57 // loop_footer
            %s213 = sadd.s32 1, %s209
          $region64: #{reverse.0} parent=57 // loop_footer_branch
            %208 = sbr.rel target = $region60
          $region65: #{reverse.0} parent=57 // loop_exit
            _
        $region58: #{reverse.0} parent=42 // pred_fallthru
          _
        // Predicated region
        $region66: #{reverse.0} parent=42 // pred_check
          _
        $region67: #{reverse.0} parent=42 // pred_check_branch
          %233 = sbr.rel target = $region69
        $region68: #{reverse.0} parent=42 // pred_region
          _
        $region69: #{reverse.0} parent=42 // pred_fallthru
          _
      $region43: #{reverse.0} parent=38 // pred_fallthru
        _
      // Predicated region
      $region44: #{reverse.0} parent=38 // pred_check
        _
      $region45: #{reverse.0} parent=38 // pred_check_branch
        %179 = sbr.rel target = $region47
      $region46: #{reverse.0} parent=38 // pred_region
        %s181 = ssub.s32 256, 1
        loop: start=0, step=1, limit=1
        $region48: #{reverse.0} parent=46 // loop_pre_header
          _
        $region49: #{reverse.0} parent=46 // loop_header
          %s183 = sphi 0, %s187
          %p184 = scmp.ge.s32.totalorder %s183, 1
          %s188 = sphi [#allocation1], [#allocation1]
          %s189 = sphi %s1, %s1
        $region50: #{reverse.0} parent=46 // loop_header_branch
          %186 = sbr.rel (%p184) target = $region54
        $region51: #{reverse.0} parent=46 // loop_body
          %v190 = vld [vmem:[%s188] sm:%s181]
          %191 = vst [vmem:[%s189] sm:%s181] %v190
          %v192 = vld [vmem:[%s188 + $0x8] sm:%s181]
          %193 = vst [vmem:[%s189 + $0x8] sm:%s181] %v192
          %v194 = vld [vmem:[%s188 + $0x10] sm:%s181]
          %195 = vst [vmem:[%s189 + $0x10] sm:%s181] %v194
          %v196 = vld [vmem:[%s188 + $0x18] sm:%s181]
          %197 = vst [vmem:[%s189 + $0x18] sm:%s181] %v196
          %v198 = vld [vmem:[%s188 + $0x20] sm:%s181]
          %199 = vst [vmem:[%s189 + $0x20] sm:%s181] %v198
          %v200 = vld [vmem:[%s188 + $0x28] sm:%s181]
          %201 = vst [vmem:[%s189 + $0x28] sm:%s181] %v200
          %v202 = vld [vmem:[%s188 + $0x30] sm:%s181]
          %203 = vst [vmem:[%s189 + $0x30] sm:%s181] %v202
          %v204 = vld [vmem:[%s188 + $0x38] sm:%s181]
          %205 = vst [vmem:[%s189 + $0x38] sm:%s181] %v204
        $region52: #{reverse.0} parent=46 // loop_footer
          %s187 = sadd.s32 1, %s183
        $region53: #{reverse.0} parent=46 // loop_footer_branch
          %182 = sbr.rel target = $region49
        $region54: #{reverse.0} parent=46 // loop_exit
          _
      $region47: #{reverse.0} parent=38 // pred_fallthru
        _
    $region39: #{reverse.0} parent=1 // pred_fallthru
      _
    %234 = vnop

// kernel: spectral_conv2d.1
$region0: #{spectral_conv2d.1}
  #allocation0 [shape = 'u32[]', space=smem, size = 0x4, offset = 0x4, fixed_abs, tag = 'smem constant byte address 0x4 - core index']
  #allocation1 [shape = 'u32[144,128]{1,0:T(1,128)}', space=vmem, size = 0x12000, scoped, tag = 'internal scratch']
  %s0 = inlined_call_operand.vmem [shape: f32[4,2,128], index: 0, kind: input, shape index: {}]
  %s1 = inlined_call_operand.vmem [shape: f32[4,2,128], index: 1, kind: input, shape index: {}]
  %s2 = inlined_call_operand.vmem [shape: f32[4,8,128], index: 2, kind: input, shape index: {}]
  %s3 = inlined_call_operand.vmem [shape: f32[4,8,128], index: 3, kind: input, shape index: {}]
  %s4 = inlined_call_operand.vmem [shape: f32[2,8,128], index: 4, kind: output, shape index: {0}]
  %s5 = inlined_call_operand.vmem [shape: f32[2,8,128], index: 5, kind: output, shape index: {1}]
  %6 = xla_tuple %s4, %s5
  %s7 = sld [smem:[#allocation0]]
  $region34: #{spectral_conv2d.1} parent=0
    _
  %s9 = ssub.s32 1, %s7
  %s10 = scalar_select 0, %s9, %s7
  // Predicated region
  $region2: #{spectral_conv2d.1} parent=0 // pred_check
    _
  $region3: #{spectral_conv2d.1} parent=0 // pred_check_branch
    %12 = sbr.rel (0) target = $region5
  $region4: #{spectral_conv2d.1} parent=0 // pred_region
    _
  $region5: #{spectral_conv2d.1} parent=0 // pred_fallthru
    _
  // Predicated region
  $region6: #{spectral_conv2d.1} parent=0 // pred_check
    _
  $region7: #{spectral_conv2d.1} parent=0 // pred_check_branch
    %14 = sbr.rel (0) target = $region9
  $region8: #{spectral_conv2d.1} parent=0 // pred_region
    _
  $region9: #{spectral_conv2d.1} parent=0 // pred_fallthru
    _
  // Predicated region
  $region10: #{spectral_conv2d.1} parent=0 // pred_check
    _
  $region11: #{spectral_conv2d.1} parent=0 // pred_check_branch
    %16 = sbr.rel (0) target = $region13
  $region12: #{spectral_conv2d.1} parent=0 // pred_region
    _
  $region13: #{spectral_conv2d.1} parent=0 // pred_fallthru
    _
  // Predicated region
  $region14: #{spectral_conv2d.1} parent=0 // pred_check
    _
  $region15: #{spectral_conv2d.1} parent=0 // pred_check_branch
    %18 = sbr.rel (0) target = $region17
  $region16: #{spectral_conv2d.1} parent=0 // pred_region
    _
  $region17: #{spectral_conv2d.1} parent=0 // pred_fallthru
    _
  %v19 = vld [vmem:[%s0] sm:$0x3]
  %v22 = vunpack.c.l.s4 1966171168
  %v23 = vunpack.c.0.s8 %v22
  %v24 = vlaneseq
  %v25 = vshrl.u32 %v24, 7
  %v26 = vsub.s32 %v23, %v25
  %v27 = vrot.slane %v19, %v26
  %v28 = vcombine.high %v27, %v27
  %v30 = vunpack.c.l.s4 1966171168
  %v31 = vunpack.c.0.s8 %v30
  %v32 = vlaneseq
  %v33 = vshrl.u32 %v32, 7
  %v34 = vsub.s32 %v31, %v33
  %v35 = vrot.slane %v27, %v34
  %v37 = vunpack.c.l.s4 1966171168
  %v38 = vunpack.c.0.s8 %v37
  %v39 = vlaneseq
  %v40 = vshrl.u32 %v39, 7
  %v41 = vsub.s32 %v38, %v40
  %v42 = vrot.slane %v28, %v41
  %v43 = vld [vmem:[%s1] sm:$0x3]
  %v46 = vunpack.c.l.s4 1966171168
  %v47 = vunpack.c.0.s8 %v46
  %v48 = vlaneseq
  %v49 = vshrl.u32 %v48, 7
  %v50 = vsub.s32 %v47, %v49
  %v51 = vrot.slane %v43, %v50
  %v52 = vcombine.high %v51, %v51
  %v54 = vunpack.c.l.s4 1966171168
  %v55 = vunpack.c.0.s8 %v54
  %v56 = vlaneseq
  %v57 = vshrl.u32 %v56, 7
  %v58 = vsub.s32 %v55, %v57
  %v59 = vrot.slane %v51, %v58
  %v61 = vunpack.c.l.s4 1966171168
  %v62 = vunpack.c.0.s8 %v61
  %v63 = vlaneseq
  %v64 = vshrl.u32 %v63, 7
  %v65 = vsub.s32 %v62, %v64
  %v66 = vrot.slane %v52, %v65
  %v67 = vld [vmem:[%s2] sm:$0xff]
  %v68 = vld [vmem:[%s3] sm:$0xff]
  %v69 = vlaneseq
  %v70 = vshrl.u32 %v69, 7
  %v71 = vsub.s32 0, %v70
  %v72 = vrot.slane %v35, %v71
  %v73 = vlaneseq
  %v74 = vshrl.u32 %v73, 7
  %v75 = vsub.s32 0, %v74
  %v76 = vrot.slane %v42, %v75
  %v79 = vmul.f32 %v72, %v67
  %v80 = vmul.f32 %v76, %v67
  %v81 = vlaneseq
  %v82 = vshrl.u32 %v81, 7
  %v83 = vsub.s32 0, %v82
  %v84 = vrot.slane %v59, %v83
  %v85 = vlaneseq
  %v86 = vshrl.u32 %v85, 7
  %v87 = vsub.s32 0, %v86
  %v88 = vrot.slane %v66, %v87
  %v91 = vmul.f32 %v84, %v68
  %v92 = vmul.f32 %v88, %v68
  %v93 = vsub.f32 %v79, %v91
  %v94 = vsub.f32 %v80, %v92
  %v95 = vmul.f32 %v72, %v68
  %v96 = vmul.f32 %v76, %v68
  %v97 = vmul.f32 %v84, %v67
  %v98 = vmul.f32 %v88, %v67
  %v99 = vadd.f32 %v95, %v97
  %v100 = vadd.f32 %v96, %v98
  %s101 = scalar_lea.vmem %s0, 2
  %v102 = vld [vmem:[%s101] sm:$0x3]
  %v105 = vunpack.c.l.s4 1966171168
  %v106 = vunpack.c.0.s8 %v105
  %v107 = vlaneseq
  %v108 = vshrl.u32 %v107, 7
  %v109 = vsub.s32 %v106, %v108
  %v110 = vrot.slane %v102, %v109
  %v111 = vcombine.high %v110, %v110
  %v113 = vunpack.c.l.s4 1966171168
  %v114 = vunpack.c.0.s8 %v113
  %v115 = vlaneseq
  %v116 = vshrl.u32 %v115, 7
  %v117 = vsub.s32 %v114, %v116
  %v118 = vrot.slane %v110, %v117
  %v120 = vunpack.c.l.s4 1966171168
  %v121 = vunpack.c.0.s8 %v120
  %v122 = vlaneseq
  %v123 = vshrl.u32 %v122, 7
  %v124 = vsub.s32 %v121, %v123
  %v125 = vrot.slane %v111, %v124
  %s126 = scalar_lea.vmem %s1, 2
  %v127 = vld [vmem:[%s126] sm:$0x3]
  %v130 = vunpack.c.l.s4 1966171168
  %v131 = vunpack.c.0.s8 %v130
  %v132 = vlaneseq
  %v133 = vshrl.u32 %v132, 7
  %v134 = vsub.s32 %v131, %v133
  %v135 = vrot.slane %v127, %v134
  %v136 = vcombine.high %v135, %v135
  %v138 = vunpack.c.l.s4 1966171168
  %v139 = vunpack.c.0.s8 %v138
  %v140 = vlaneseq
  %v141 = vshrl.u32 %v140, 7
  %v142 = vsub.s32 %v139, %v141
  %v143 = vrot.slane %v135, %v142
  %v145 = vunpack.c.l.s4 1966171168
  %v146 = vunpack.c.0.s8 %v145
  %v147 = vlaneseq
  %v148 = vshrl.u32 %v147, 7
  %v149 = vsub.s32 %v146, %v148
  %v150 = vrot.slane %v136, %v149
  %s151 = scalar_lea.vmem %s2, 8
  %v152 = vld [vmem:[%s151] sm:$0xff]
  %s153 = scalar_lea.vmem %s3, 8
  %v154 = vld [vmem:[%s153] sm:$0xff]
  %v155 = vlaneseq
  %v156 = vshrl.u32 %v155, 7
  %v157 = vsub.s32 0, %v156
  %v158 = vrot.slane %v118, %v157
  %v159 = vlaneseq
  %v160 = vshrl.u32 %v159, 7
  %v161 = vsub.s32 0, %v160
  %v162 = vrot.slane %v125, %v161
  %v165 = vmul.f32 %v158, %v152
  %v166 = vmul.f32 %v162, %v152
  %v167 = vlaneseq
  %v168 = vshrl.u32 %v167, 7
  %v169 = vsub.s32 0, %v168
  %v170 = vrot.slane %v143, %v169
  %v171 = vlaneseq
  %v172 = vshrl.u32 %v171, 7
  %v173 = vsub.s32 0, %v172
  %v174 = vrot.slane %v150, %v173
  %v177 = vmul.f32 %v170, %v154
  %v178 = vmul.f32 %v174, %v154
  %v179 = vsub.f32 %v165, %v177
  %v180 = vsub.f32 %v166, %v178
  %v181 = vmul.f32 %v158, %v154
  %v182 = vmul.f32 %v162, %v154
  %v183 = vmul.f32 %v170, %v152
  %v184 = vmul.f32 %v174, %v152
  %v185 = vadd.f32 %v181, %v183
  %v186 = vadd.f32 %v182, %v184
  %v187 = vadd.f32 %v93, %v179
  %v188 = vadd.f32 %v94, %v180
  %v189 = vadd.f32 %v99, %v185
  %v190 = vadd.f32 %v100, %v186
  %191 = vst [vmem:[%s4] sm:$0xff] %v187
  %192 = vst [vmem:[%s4 + $0x8] sm:$0xff] %v188
  %193 = vst [vmem:[%s5] sm:$0xff] %v189
  %194 = vst [vmem:[%s5 + $0x8] sm:$0xff] %v190
  %s195 = scalar_lea.vmem %s0, 4
  %v196 = vld [vmem:[%s195] sm:$0x3]
  %v199 = vunpack.c.l.s4 1966171168
  %v200 = vunpack.c.0.s8 %v199
  %v201 = vlaneseq
  %v202 = vshrl.u32 %v201, 7
  %v203 = vsub.s32 %v200, %v202
  %v204 = vrot.slane %v196, %v203
  %v205 = vcombine.high %v204, %v204
  %v207 = vunpack.c.l.s4 1966171168
  %v208 = vunpack.c.0.s8 %v207
  %v209 = vlaneseq
  %v210 = vshrl.u32 %v209, 7
  %v211 = vsub.s32 %v208, %v210
  %v212 = vrot.slane %v204, %v211
  %v214 = vunpack.c.l.s4 1966171168
  %v215 = vunpack.c.0.s8 %v214
  %v216 = vlaneseq
  %v217 = vshrl.u32 %v216, 7
  %v218 = vsub.s32 %v215, %v217
  %v219 = vrot.slane %v205, %v218
  %s220 = scalar_lea.vmem %s1, 4
  %v221 = vld [vmem:[%s220] sm:$0x3]
  %v224 = vunpack.c.l.s4 1966171168
  %v225 = vunpack.c.0.s8 %v224
  %v226 = vlaneseq
  %v227 = vshrl.u32 %v226, 7
  %v228 = vsub.s32 %v225, %v227
  %v229 = vrot.slane %v221, %v228
  %v230 = vcombine.high %v229, %v229
  %v232 = vunpack.c.l.s4 1966171168
  %v233 = vunpack.c.0.s8 %v232
  %v234 = vlaneseq
  %v235 = vshrl.u32 %v234, 7
  %v236 = vsub.s32 %v233, %v235
  %v237 = vrot.slane %v229, %v236
  %v239 = vunpack.c.l.s4 1966171168
  %v240 = vunpack.c.0.s8 %v239
  %v241 = vlaneseq
  %v242 = vshrl.u32 %v241, 7
  %v243 = vsub.s32 %v240, %v242
  %v244 = vrot.slane %v230, %v243
  %s245 = scalar_lea.vmem %s2, 16
  %v246 = vld [vmem:[%s245] sm:$0xff]
  %s247 = scalar_lea.vmem %s3, 16
  %v248 = vld [vmem:[%s247] sm:$0xff]
  %v249 = vlaneseq
  %v250 = vshrl.u32 %v249, 7
  %v251 = vsub.s32 0, %v250
  %v252 = vrot.slane %v212, %v251
  %v253 = vlaneseq
  %v254 = vshrl.u32 %v253, 7
  %v255 = vsub.s32 0, %v254
  %v256 = vrot.slane %v219, %v255
  %v259 = vmul.f32 %v252, %v246
  %v260 = vmul.f32 %v256, %v246
  %v261 = vlaneseq
  %v262 = vshrl.u32 %v261, 7
  %v263 = vsub.s32 0, %v262
  %v264 = vrot.slane %v237, %v263
  %v265 = vlaneseq
  %v266 = vshrl.u32 %v265, 7
  %v267 = vsub.s32 0, %v266
  %v268 = vrot.slane %v244, %v267
  %v271 = vmul.f32 %v264, %v248
  %v272 = vmul.f32 %v268, %v248
  %v273 = vsub.f32 %v259, %v271
  %v274 = vsub.f32 %v260, %v272
  %v275 = vmul.f32 %v252, %v248
  %v276 = vmul.f32 %v256, %v248
  %v277 = vmul.f32 %v264, %v246
  %v278 = vmul.f32 %v268, %v246
  %v279 = vadd.f32 %v275, %v277
  %v280 = vadd.f32 %v276, %v278
  %s281 = scalar_lea.vmem %s0, 6
  %v282 = vld [vmem:[%s281] sm:$0x3]
  %v285 = vunpack.c.l.s4 1966171168
  %v286 = vunpack.c.0.s8 %v285
  %v287 = vlaneseq
  %v288 = vshrl.u32 %v287, 7
  %v289 = vsub.s32 %v286, %v288
  %v290 = vrot.slane %v282, %v289
  %v291 = vcombine.high %v290, %v290
  %v293 = vunpack.c.l.s4 1966171168
  %v294 = vunpack.c.0.s8 %v293
  %v295 = vlaneseq
  %v296 = vshrl.u32 %v295, 7
  %v297 = vsub.s32 %v294, %v296
  %v298 = vrot.slane %v290, %v297
  %v300 = vunpack.c.l.s4 1966171168
  %v301 = vunpack.c.0.s8 %v300
  %v302 = vlaneseq
  %v303 = vshrl.u32 %v302, 7
  %v304 = vsub.s32 %v301, %v303
  %v305 = vrot.slane %v291, %v304
  %s306 = scalar_lea.vmem %s1, 6
  %v307 = vld [vmem:[%s306] sm:$0x3]
  %v310 = vunpack.c.l.s4 1966171168
  %v311 = vunpack.c.0.s8 %v310
  %v312 = vlaneseq
  %v313 = vshrl.u32 %v312, 7
  %v314 = vsub.s32 %v311, %v313
  %v315 = vrot.slane %v307, %v314
  %v316 = vcombine.high %v315, %v315
  %v318 = vunpack.c.l.s4 1966171168
  %v319 = vunpack.c.0.s8 %v318
  %v320 = vlaneseq
  %v321 = vshrl.u32 %v320, 7
  %v322 = vsub.s32 %v319, %v321
  %v323 = vrot.slane %v315, %v322
  %v325 = vunpack.c.l.s4 1966171168
  %v326 = vunpack.c.0.s8 %v325
  %v327 = vlaneseq
  %v328 = vshrl.u32 %v327, 7
  %v329 = vsub.s32 %v326, %v328
  %v330 = vrot.slane %v316, %v329
  %s331 = scalar_lea.vmem %s2, 24
  %v332 = vld [vmem:[%s331] sm:$0xff]
  %s333 = scalar_lea.vmem %s3, 24
  %v334 = vld [vmem:[%s333] sm:$0xff]
  %v335 = vlaneseq
  %v336 = vshrl.u32 %v335, 7
  %v337 = vsub.s32 0, %v336
  %v338 = vrot.slane %v298, %v337
  %v339 = vlaneseq
  %v340 = vshrl.u32 %v339, 7
  %v341 = vsub.s32 0, %v340
  %v342 = vrot.slane %v305, %v341
  %v345 = vmul.f32 %v338, %v332
  %v346 = vmul.f32 %v342, %v332
  %v347 = vlaneseq
  %v348 = vshrl.u32 %v347, 7
  %v349 = vsub.s32 0, %v348
  %v350 = vrot.slane %v323, %v349
  %v351 = vlaneseq
  %v352 = vshrl.u32 %v351, 7
  %v353 = vsub.s32 0, %v352
  %v354 = vrot.slane %v330, %v353
  %v357 = vmul.f32 %v350, %v334
  %v358 = vmul.f32 %v354, %v334
  %v359 = vsub.f32 %v345, %v357
  %v360 = vsub.f32 %v346, %v358
  %v361 = vmul.f32 %v338, %v334
  %v362 = vmul.f32 %v342, %v334
  %v363 = vmul.f32 %v350, %v332
  %v364 = vmul.f32 %v354, %v332
  %v365 = vadd.f32 %v361, %v363
  %v366 = vadd.f32 %v362, %v364
  %v367 = vld [vmem:[%s4] sm:$0xff]
  %v368 = vld [vmem:[%s4 + $0x8] sm:$0xff]
  %v369 = vadd.f32 %v273, %v359
  %v370 = vadd.f32 %v274, %v360
  %v371 = vadd.f32 %v367, %v369
  %v372 = vadd.f32 %v368, %v370
  %373 = vst [vmem:[%s4] sm:$0xff] %v371
  %374 = vst [vmem:[%s4 + $0x8] sm:$0xff] %v372
  %v375 = vld [vmem:[%s5] sm:$0xff]
  %v376 = vld [vmem:[%s5 + $0x8] sm:$0xff]
  %v377 = vadd.f32 %v279, %v365
  %v378 = vadd.f32 %v280, %v366
  %v379 = vadd.f32 %v375, %v377
  %v380 = vadd.f32 %v376, %v378
  %381 = vst [vmem:[%s5] sm:$0xff] %v379
  %382 = vst [vmem:[%s5 + $0x8] sm:$0xff] %v380
  // Predicated region
  $region18: #{spectral_conv2d.1} parent=0 // pred_check
    _
  $region19: #{spectral_conv2d.1} parent=0 // pred_check_branch
    %384 = sbr.rel (0) target = $region21
  $region20: #{spectral_conv2d.1} parent=0 // pred_region
    _
  $region21: #{spectral_conv2d.1} parent=0 // pred_fallthru
    _
  // Predicated region
  $region22: #{spectral_conv2d.1} parent=0 // pred_check
    _
  $region23: #{spectral_conv2d.1} parent=0 // pred_check_branch
    %386 = sbr.rel (0) target = $region25
  $region24: #{spectral_conv2d.1} parent=0 // pred_region
    _
  $region25: #{spectral_conv2d.1} parent=0 // pred_fallthru
    _
  // Predicated region
  $region26: #{spectral_conv2d.1} parent=0 // pred_check
    _
  $region27: #{spectral_conv2d.1} parent=0 // pred_check_branch
    %388 = sbr.rel (0) target = $region29
  $region28: #{spectral_conv2d.1} parent=0 // pred_region
    _
  $region29: #{spectral_conv2d.1} parent=0 // pred_fallthru
    _
  // Predicated region
  $region30: #{spectral_conv2d.1} parent=0 // pred_check
    _
  $region31: #{spectral_conv2d.1} parent=0 // pred_check_branch
    %390 = sbr.rel (0) target = $region33
  $region32: #{spectral_conv2d.1} parent=0 // pred_region
    _
  $region33: #{spectral_conv2d.1} parent=0 // pred_fallthru
    _

</llo_original>
